<compile_context>
chip_gen: v7x
topology: tpu7x:2x2x1
jax: 0.10.0
libtpu: 0.0.40
codegen_flags: <defaults>
</compile_context>

<pallas_src>
import functools

import jax
import jax.numpy as jnp
from jax import lax
from jax.experimental import pallas as pl
from jax.experimental.pallas import tpu as pltpu


def promotion_kernel(x_ref, w1_ref, b1_ref, w2_ref, b2_ref, w3_ref, b3_ref,
                     out_ref, *, mxu_dtype):
    x = x_ref[...]
    w1 = w1_ref[...]
    w2 = w2_ref[...]
    w3 = w3_ref[...]
    if mxu_dtype != jnp.float32:
        # Only the MXU operands are cast; element-wise math stays f32.
        x, w1, w2, w3 = (t.astype(mxu_dtype) for t in (x, w1, w2, w3))

    # Layer 1: contract the 64-feature axes of (16,64) and (tile_b,64) on the
    # MXU, producing h1 directly in the transposed (16, tile_b) layout.
    h1 = lax.dot_general(
        w1, x,
        dimension_numbers=(((1,), (1,)), ((), ())),
        preferred_element_type=jnp.float32)
    h1 = jnp.maximum(h1 + b1_ref[...], 0.0)          # bias (16,1) broadcasts on lanes

    # Layer 2: (16,16) @ (16,tile_b) -> (16,tile_b), ReLU.
    h1_m = h1 if mxu_dtype == jnp.float32 else h1.astype(mxu_dtype)
    h2 = jnp.dot(w2, h1_m, preferred_element_type=jnp.float32)
    h2 = jnp.maximum(h2 + b2_ref[...], 0.0)

    # Output layer: (4,16) @ (16,tile_b) -> (4,tile_b).
    h2_m = h2 if mxu_dtype == jnp.float32 else h2.astype(mxu_dtype)
    logits = jnp.dot(w3, h2_m, preferred_element_type=jnp.float32)
    logits = logits + b3_ref[...]

    # Softmax over features = sublane axis 0 (only 4 rows -> cheap reduce).
    m = jnp.max(logits, axis=0, keepdims=True)
    e = jnp.exp(logits - m)
    denom = jnp.sum(e, axis=0, keepdims=True)
    # EUP approximate reciprocal + one Newton step: ~fp32 accuracy, divide off
    # the VALU.
    r = pl.reciprocal(denom, approx=True)
    r = r * (2.0 - denom * r)
    out_ref[...] = e * r


def _default_target_tile_b():
    kind = ""
    try:
        kind = jax.devices()[0].device_kind.lower()
    except Exception:
        pass
    if "v6" in kind:
        return 32768          # 128 MiB VMEM: biggest tiles, fewest grid steps
    # v5e (raise past its 16 MiB scoped default below) / v7x (64 MiB VMEM) /
    # unknown: 16384 keeps the budget comfortably under 32 MiB live.
    return 16384


def _vmem_limit_bytes(tile_b, x_buffers):
    # (tile_b, 64) f32 x block is lane-padded to 128 in VMEM.
    x_bytes = x_buffers * tile_b * 128 * 4
    # (4, tile_b) f32 output, sublane-padded to 8, double-buffered.
    out_bytes = 2 * tile_b * 8 * 4
    # h1/h2/logits/exp-style (16, tile_b) f32 temporaries.
    tmp_bytes = 4 * tile_b * 16 * 4
    need = x_bytes + out_bytes + tmp_bytes + (1 << 20)   # + weights/slack
    est = int(need * 1.25) + (4 << 20)

    cap = 64 << 20                                       # safe on every gen
    try:
        cap = int(pltpu.get_tpu_info().vmem_capacity_bytes * 0.9)
    except Exception:
        pass
    return max(32 << 20, min(est, cap))


def promotion_network(x, params, *, target_tile_b=None,
                      mxu_dtype=jnp.float32, x_buffer_count=2):
    """Fused PromotionNetwork forward. x: (B, 64) float32 -> (B, 4) float32."""
    w1, b1, w2, b2, w3, b3 = params
    B, feat = x.shape
    assert feat == 64

    if target_tile_b is None:
        target_tile_b = _default_target_tile_b()

    # Balanced batch tiling (lane granularity 128).
    n_tiles = max(1, pl.cdiv(B, target_tile_b))
    tile_b = max(128, pl.cdiv(pl.cdiv(B, n_tiles), 128) * 128)
    n_tiles = pl.cdiv(B, tile_b)                 # drop fully-padded tiles
    if n_tiles == 1 and tile_b >= 256:
        # Split a lone tile so both v7x TensorCores get work.
        tile_b = max(128, pl.cdiv(pl.cdiv(B, 2), 128) * 128)
        n_tiles = pl.cdiv(B, tile_b)
    b_pad = n_tiles * tile_b

    x_in = x
    if b_pad != B and B <= 32768:
        # Small input: pad host-side (copy cost negligible, simplest path).
        x_in = jnp.pad(x, ((0, b_pad - B), (0, 0)))
    # else (large ragged B): pass x unpadded; Pallas clamps the final partial
    # block's DMA, its garbage columns stay per-column-local and are sliced
    # off below — avoids a full HBM read+write of x just to pad the tail.

    def const_spec(shape):
        # Weights/biases: constant index_map -> fetched once, VMEM-resident.
        return pl.BlockSpec(shape, lambda i: tuple(0 for _ in shape))

    x_spec_kwargs = {}
    if x_buffer_count != 2:
        x_spec_kwargs["pipeline_mode"] = pl.Buffered(x_buffer_count)
    x_spec = pl.BlockSpec((tile_b, 64), lambda i: (i, 0), **x_spec_kwargs)

    kernel = functools.partial(promotion_kernel, mxu_dtype=mxu_dtype)

    out_t = pl.pallas_call(
        kernel,
        out_shape=jax.ShapeDtypeStruct((4, b_pad), jnp.float32),
        grid=(n_tiles,),
        in_specs=[
            x_spec,                      # x: pipelined per batch tile
            const_spec(w1.shape),
            const_spec(b1.shape),
            const_spec(w2.shape),
            const_spec(b2.shape),
            const_spec(w3.shape),
            const_spec(b3.shape),
        ],
        out_specs=pl.BlockSpec((4, tile_b), lambda i: (0, i)),
        compiler_params=pltpu.CompilerParams(
            dimension_semantics=("parallel",),
            vmem_limit_bytes=_vmem_limit_bytes(tile_b, x_buffer_count)),
    )(x_in, w1, b1, w2, b2, w3, b3)

    # Lane-dense (4, b_pad) slab -> strip padding, transpose to (B, 4) in XLA.
    return out_t[:, :B].T


def init_params(key):
    """PyTorch nn.Linear-style init: W (out,in), b (out,1), U[-1/sqrt(fan_in), +]."""
    def linear(key, fan_in, fan_out):
        kw, kb = jax.random.split(key)
        bound = 1.0 / jnp.sqrt(fan_in)
        w = jax.random.uniform(kw, (fan_out, fan_in), jnp.float32, -bound, bound)
        b = jax.random.uniform(kb, (fan_out, 1), jnp.float32, -bound, bound)
        return w, b

    k1, k2, k3 = jax.random.split(key, 3)
    w1, b1 = linear(k1, 64, 16)
    w2, b2 = linear(k2, 16, 16)
    w3, b3 = linear(k3, 16, 4)
    return (w1, b1, w2, b2, w3, b3)


def reference(x, params):
    w1, b1, w2, b2, w3, b3 = params
    h1 = jnp.maximum(x @ w1.T + b1[:, 0], 0.0)
    h2 = jnp.maximum(h1 @ w2.T + b2[:, 0], 0.0)
    logits = h2 @ w3.T + b3[:, 0]
    return jax.nn.softmax(logits, axis=-1)


if __name__ == "__main__":
    key = jax.random.PRNGKey(0)
    kx, kp = jax.random.split(key)

    batch = 8
    x = jax.random.normal(kx, (batch, 64), dtype=jnp.float32)
    params = init_params(kp)

    out = promotion_network(x, params)
    out = jax.block_until_ready(out)

    ref = reference(x, params)
    assert out.shape == (batch, 4)
    max_err = float(jnp.max(jnp.abs(out - ref)))
    assert max_err < 5e-5, f"max abs diff {max_err}"
    assert jnp.allclose(jnp.sum(out, axis=-1), 1.0, atol=1e-5)

    print("KERNEL_OK")
</pallas_src>

<mosaic_0001>
module attributes {stable_mosaic.version = 11 : i64} {
  func.func @promotion_kernel(%arg0: i32, %arg1: memref<128x64xf32, #tpu.memory_space<vmem>>, %arg2: memref<16x64xf32, #tpu.memory_space<vmem>>, %arg3: memref<16x1xf32, #tpu.memory_space<vmem>>, %arg4: memref<16x16xf32, #tpu.memory_space<vmem>>, %arg5: memref<16x1xf32, #tpu.memory_space<vmem>>, %arg6: memref<4x16xf32, #tpu.memory_space<vmem>>, %arg7: memref<4x1xf32, #tpu.memory_space<vmem>>, %arg8: memref<4x128xf32, #tpu.memory_space<vmem>>) attributes {dimension_semantics = [#tpu.dimension_semantics<parallel>], iteration_bounds = array<i64: 1>, scalar_prefetch = 0 : i64, scratch_operands = 0 : i64, tpu.core_type = #tpu.core_type<tc>, window_params = [{transform_indices = @transform_0, window_bounds = array<i64: 128, 64>}, {pipeline_mode = #tpu.pipeline_mode<synchronous>, transform_indices = @transform_1, window_bounds = array<i64: 16, 64>}, {pipeline_mode = #tpu.pipeline_mode<synchronous>, transform_indices = @transform_2, window_bounds = array<i64: 16, 1>}, {pipeline_mode = #tpu.pipeline_mode<synchronous>, transform_indices = @transform_3, window_bounds = array<i64: 16, 16>}, {pipeline_mode = #tpu.pipeline_mode<synchronous>, transform_indices = @transform_4, window_bounds = array<i64: 16, 1>}, {pipeline_mode = #tpu.pipeline_mode<synchronous>, transform_indices = @transform_5, window_bounds = array<i64: 4, 16>}, {pipeline_mode = #tpu.pipeline_mode<synchronous>, transform_indices = @transform_6, window_bounds = array<i64: 4, 1>}, {transform_indices = @transform_7, window_bounds = array<i64: 4, 128>}]} {
    %c0 = arith.constant 0 : index
    %c0_0 = arith.constant 0 : index
    %0 = vector.load %arg1[%c0, %c0_0] : memref<128x64xf32, #tpu.memory_space<vmem>>, vector<128x64xf32>
    %c0_1 = arith.constant 0 : index
    %c0_2 = arith.constant 0 : index
    %1 = vector.load %arg2[%c0_1, %c0_2] : memref<16x64xf32, #tpu.memory_space<vmem>>, vector<16x64xf32>
    %c0_3 = arith.constant 0 : index
    %c0_4 = arith.constant 0 : index
    %2 = vector.load %arg4[%c0_3, %c0_4] : memref<16x16xf32, #tpu.memory_space<vmem>>, vector<16x16xf32>
    %c0_5 = arith.constant 0 : index
    %c0_6 = arith.constant 0 : index
    %3 = vector.load %arg6[%c0_5, %c0_6] : memref<4x16xf32, #tpu.memory_space<vmem>>, vector<4x16xf32>
    %cst = arith.constant dense<0.000000e+00> : vector<16x128xf32>
    %4 = tpu.matmul %1, %0, %cst {dimension_numbers = #tpu.dot_dimension_numbers<[1], [1], [0], [0], [0, 0, 1, 0], [], []>} : vector<16x64xf32>, vector<128x64xf32>, vector<16x128xf32> -> vector<16x128xf32>
    %c0_7 = arith.constant 0 : index
    %c0_8 = arith.constant 0 : index
    %5 = vector.load %arg3[%c0_7, %c0_8] : memref<16x1xf32, #tpu.memory_space<vmem>>, vector<16x1xf32>
    %6 = vector.broadcast %5 : vector<16x1xf32> to vector<16x128xf32>
    %7 = arith.addf %4, %6 : vector<16x128xf32>
    %cst_9 = arith.constant 0.000000e+00 : f32
    %8 = vector.broadcast %cst_9 : f32 to vector<16x128xf32>
    %9 = arith.maximumf %7, %8 : vector<16x128xf32>
    %cst_10 = arith.constant dense<0.000000e+00> : vector<16x128xf32>
    %10 = tpu.matmul %2, %9, %cst_10 {dimension_numbers = #tpu.dot_dimension_numbers<[1], [0], [0], [1], [0, 0, 1, 1], [], []>} : vector<16x16xf32>, vector<16x128xf32>, vector<16x128xf32> -> vector<16x128xf32>
    %c0_11 = arith.constant 0 : index
    %c0_12 = arith.constant 0 : index
    %11 = vector.load %arg5[%c0_11, %c0_12] : memref<16x1xf32, #tpu.memory_space<vmem>>, vector<16x1xf32>
    %12 = vector.broadcast %11 : vector<16x1xf32> to vector<16x128xf32>
    %13 = arith.addf %10, %12 : vector<16x128xf32>
    %cst_13 = arith.constant 0.000000e+00 : f32
    %14 = vector.broadcast %cst_13 : f32 to vector<16x128xf32>
    %15 = arith.maximumf %13, %14 : vector<16x128xf32>
    %cst_14 = arith.constant dense<0.000000e+00> : vector<4x128xf32>
    %16 = tpu.matmul %3, %15, %cst_14 {dimension_numbers = #tpu.dot_dimension_numbers<[1], [0], [0], [1], [0, 0, 1, 1], [], []>} : vector<4x16xf32>, vector<16x128xf32>, vector<4x128xf32> -> vector<4x128xf32>
    %c0_15 = arith.constant 0 : index
    %c0_16 = arith.constant 0 : index
    %17 = vector.load %arg7[%c0_15, %c0_16] : memref<4x1xf32, #tpu.memory_space<vmem>>, vector<4x1xf32>
    %18 = vector.broadcast %17 : vector<4x1xf32> to vector<4x128xf32>
    %19 = arith.addf %16, %18 : vector<4x128xf32>
    %cst_17 = arith.constant dense<0xFF800000> : vector<128xf32>
    %20 = vector.multi_reduction <maximumf>, %19, %cst_17 [0] : vector<4x128xf32> to vector<128xf32>
    %21 = vector.shape_cast %20 : vector<128xf32> to vector<1x128xf32>
    %22 = vector.broadcast %21 : vector<1x128xf32> to vector<4x128xf32>
    %23 = arith.subf %19, %22 : vector<4x128xf32>
    %24 = math.exp %23 : vector<4x128xf32>
    %cst_18 = arith.constant dense<0.000000e+00> : vector<128xf32>
    %25 = vector.multi_reduction <add>, %24, %cst_18 [0] : vector<4x128xf32> to vector<128xf32>
    %26 = vector.shape_cast %25 : vector<128xf32> to vector<1x128xf32>
    %27 = tpu.reciprocal %26 {approx = true} : vector<1x128xf32> -> vector<1x128xf32>
    %28 = arith.mulf %26, %27 : vector<1x128xf32>
    %cst_19 = arith.constant 2.000000e+00 : f32
    %29 = vector.broadcast %cst_19 : f32 to vector<1x128xf32>
    %30 = arith.subf %29, %28 : vector<1x128xf32>
    %31 = arith.mulf %27, %30 : vector<1x128xf32>
    %32 = vector.broadcast %31 : vector<1x128xf32> to vector<4x128xf32>
    %33 = arith.mulf %24, %32 : vector<4x128xf32>
    %c0_20 = arith.constant 0 : index
    %c0_21 = arith.constant 0 : index
    %34 = vector.load %arg8[%c0_20, %c0_21] : memref<4x128xf32, #tpu.memory_space<vmem>>, vector<4x128xf32>
    tpu.vector_store %arg8[%c0_20, %c0_21], %33 {strides = array<i32>} : memref<4x128xf32, #tpu.memory_space<vmem>>, vector<4x128xf32>,
    return
  }
  func.func @transform_0(%arg0: i32) -> (i32, i32) {
    %c0_i32 = arith.constant 0 : i32
    %c0_i32_0 = arith.constant 0 : i32
    return %arg0, %c0_i32 : i32, i32
  }
  func.func @transform_1(%arg0: i32) -> (i32, i32) {
    %c0_i32 = arith.constant 0 : i32
    %c0_i32_0 = arith.constant 0 : i32
    %c0_i32_1 = arith.constant 0 : i32
    return %c0_i32, %c0_i32_0 : i32, i32
  }
  func.func @transform_2(%arg0: i32) -> (i32, i32) {
    %c0_i32 = arith.constant 0 : i32
    %c0_i32_0 = arith.constant 0 : i32
    %c0_i32_1 = arith.constant 0 : i32
    return %c0_i32, %c0_i32_0 : i32, i32
  }
  func.func @transform_3(%arg0: i32) -> (i32, i32) {
    %c0_i32 = arith.constant 0 : i32
    %c0_i32_0 = arith.constant 0 : i32
    %c0_i32_1 = arith.constant 0 : i32
    return %c0_i32, %c0_i32_0 : i32, i32
  }
  func.func @transform_4(%arg0: i32) -> (i32, i32) {
    %c0_i32 = arith.constant 0 : i32
    %c0_i32_0 = arith.constant 0 : i32
    %c0_i32_1 = arith.constant 0 : i32
    return %c0_i32, %c0_i32_0 : i32, i32
  }
  func.func @transform_5(%arg0: i32) -> (i32, i32) {
    %c0_i32 = arith.constant 0 : i32
    %c0_i32_0 = arith.constant 0 : i32
    %c0_i32_1 = arith.constant 0 : i32
    return %c0_i32, %c0_i32_0 : i32, i32
  }
  func.func @transform_6(%arg0: i32) -> (i32, i32) {
    %c0_i32 = arith.constant 0 : i32
    %c0_i32_0 = arith.constant 0 : i32
    %c0_i32_1 = arith.constant 0 : i32
    return %c0_i32, %c0_i32_0 : i32, i32
  }
  func.func @transform_7(%arg0: i32) -> (i32, i32) {
    %c0_i32 = arith.constant 0 : i32
    %c0_i32_0 = arith.constant 0 : i32
    return %c0_i32, %arg0 : i32, i32
  }
}

</mosaic_0001>

<llo_original>
// kernel: tpu_custom_call.1
$region0: #{tpu_custom_call.1}
  #allocation0 [shape = 'u32[]', space=smem, size = 0x4, offset = 0x4, fixed_abs, tag = 'smem constant byte address 0x4 - core index']
  #allocation1 [shape = 'u32[144,128]{1,0:T(1,128)}', space=vmem, size = 0x12000, scoped, tag = 'internal scratch']
  %s0 = inlined_call_operand.vmem [shape: f32[128,64], index: 0, kind: input, shape index: {}]
  %s1 = inlined_call_operand.vmem [shape: f32[16,64], index: 1, kind: input, shape index: {}]
  %s2 = inlined_call_operand.vmem [shape: f32[16,1], index: 2, kind: input, shape index: {}]
  %s3 = inlined_call_operand.vmem [shape: f32[16,16], index: 3, kind: input, shape index: {}]
  %s4 = inlined_call_operand.vmem [shape: f32[16,1], index: 4, kind: input, shape index: {}]
  %s5 = inlined_call_operand.vmem [shape: f32[4,16], index: 5, kind: input, shape index: {}]
  %s6 = inlined_call_operand.vmem [shape: f32[4,1], index: 6, kind: input, shape index: {}]
  %s7 = inlined_call_operand.hbm [shape: f32[4,128], index: 7, kind: output, shape index: {}]
  %s8 = sld [smem:[#allocation0]]
  $region38: #{tpu_custom_call.1} parent=0
    _
  %s10 = ssub.s32 1, %s8
  %s11 = scalar_select 0, %s10, %s8
  $region1: #{tpu_custom_call.1} parent=0
    #allocation2 [shape = 'u8[2048]{0}', space=vmem, size = 0x800, scoped, tag = 'output window, operand 0, single buffered']
    #allocation3 [shape = 's32[1]{0}', space=sflag, size = 0x4, scoped, tag = 'scoped memory for tpu_custom_call.1']
    %12 = vsyncpa [#allocation3], 0
    // Predicated region
    $region2: #{tpu_custom_call.1} parent=1 // pred_check
      _
    $region3: #{tpu_custom_call.1} parent=1 // pred_check_branch
      %14 = sbr.rel (0) target = $region5
    $region4: #{tpu_custom_call.1} parent=1 // pred_region
      _
    $region5: #{tpu_custom_call.1} parent=1 // pred_fallthru
      _
    // Predicated region
    $region6: #{tpu_custom_call.1} parent=1 // pred_check
      _
    $region7: #{tpu_custom_call.1} parent=1 // pred_check_branch
      %16 = sbr.rel (0) target = $region9
    $region8: #{tpu_custom_call.1} parent=1 // pred_region
      _
    $region9: #{tpu_custom_call.1} parent=1 // pred_fallthru
      _
    // Predicated region
    $region10: #{tpu_custom_call.1} parent=1 // pred_check
      _
    $region11: #{tpu_custom_call.1} parent=1 // pred_check_branch
      %18 = sbr.rel (0) target = $region13
    $region12: #{tpu_custom_call.1} parent=1 // pred_region
      _
    $region13: #{tpu_custom_call.1} parent=1 // pred_fallthru
      _
    // Predicated region
    $region14: #{tpu_custom_call.1} parent=1 // pred_check
      _
    $region15: #{tpu_custom_call.1} parent=1 // pred_check_branch
      %20 = sbr.rel (0) target = $region17
    $region16: #{tpu_custom_call.1} parent=1 // pred_region
      _
    $region17: #{tpu_custom_call.1} parent=1 // pred_fallthru
      _
    // Predicated region
    $region18: #{tpu_custom_call.1} parent=1 // pred_check
      _
    $region19: #{tpu_custom_call.1} parent=1 // pred_check_branch
      %22 = sbr.rel (0) target = $region21
    $region20: #{tpu_custom_call.1} parent=1 // pred_region
      _
    $region21: #{tpu_custom_call.1} parent=1 // pred_fallthru
      _
    // Predicated region
    $region22: #{tpu_custom_call.1} parent=1 // pred_check
      _
    $region23: #{tpu_custom_call.1} parent=1 // pred_check_branch
      %24 = sbr.rel (0) target = $region25
    $region24: #{tpu_custom_call.1} parent=1 // pred_region
      _
    $region25: #{tpu_custom_call.1} parent=1 // pred_fallthru
      _
    // Predicated region
    $region26: #{tpu_custom_call.1} parent=1 // pred_check
      _
    $region27: #{tpu_custom_call.1} parent=1 // pred_check_branch
      %26 = sbr.rel (0) target = $region29
    $region28: #{tpu_custom_call.1} parent=1 // pred_region
      _
    $region29: #{tpu_custom_call.1} parent=1 // pred_fallthru
      _
    %v27 = vld [vmem:[%s0] sm:$0xff]
    %v28 = vld [vmem:[%s0 + $0x8] sm:$0xff]
    %v29 = vld [vmem:[%s0 + $0x10] sm:$0xff]
    %v30 = vld [vmem:[%s0 + $0x18] sm:$0xff]
    %v31 = vld [vmem:[%s0 + $0x20] sm:$0xff]
    %v32 = vld [vmem:[%s0 + $0x28] sm:$0xff]
    %v33 = vld [vmem:[%s0 + $0x30] sm:$0xff]
    %v34 = vld [vmem:[%s0 + $0x38] sm:$0xff]
    %v35 = vld [vmem:[%s0 + $0x40] sm:$0xff]
    %v36 = vld [vmem:[%s0 + $0x48] sm:$0xff]
    %v37 = vld [vmem:[%s0 + $0x50] sm:$0xff]
    %v38 = vld [vmem:[%s0 + $0x58] sm:$0xff]
    %v39 = vld [vmem:[%s0 + $0x60] sm:$0xff]
    %v40 = vld [vmem:[%s0 + $0x68] sm:$0xff]
    %v41 = vld [vmem:[%s0 + $0x70] sm:$0xff]
    %v42 = vld [vmem:[%s0 + $0x78] sm:$0xff]
    %v43 = vld [vmem:[%s1] sm:$0xff]
    %v44 = vld [vmem:[%s1 + $0x8] sm:$0xff]
    %v45 = vld [vmem:[%s3] sm:$0xff]
    %v46 = vld [vmem:[%s3 + $0x8] sm:$0xff]
    %v47 = vld [vmem:[%s5] sm:$0xf]
    %v48 = vld [vmem:[%s2] sm:$0xff]
    %v49 = vld [vmem:[%s2 + $0x8] sm:$0xff]
    %51 = vset.pattern.permute.xlu0 0
    %52 = vperm.xlu0 %51, %v48
    %v53 = vpop.permute.xlu0 %52
    %56 = vset.pattern.permute.xlu0 0
    %57 = vperm.xlu0 %56, %v49
    %v58 = vpop.permute.xlu0 %57
    %vm60 = vcmask 523264
    %v62 = vsel %vm60, %v43, 0
    %v65 = vsel %vm60, %v44, 0
    %v68 = vsel %vm60, %v27, 0
    %v71 = vsel %vm60, %v28, 0
    %v74 = vsel %vm60, %v29, 0
    %v77 = vsel %vm60, %v30, 0
    %v80 = vsel %vm60, %v31, 0
    %v83 = vsel %vm60, %v32, 0
    %v86 = vsel %vm60, %v33, 0
    %v89 = vsel %vm60, %v34, 0
    %v92 = vsel %vm60, %v35, 0
    %v95 = vsel %vm60, %v36, 0
    %v98 = vsel %vm60, %v37, 0
    %v101 = vsel %vm60, %v38, 0
    %v104 = vsel %vm60, %v39, 0
    %v107 = vsel %vm60, %v40, 0
    %v110 = vsel %vm60, %v41, 0
    %v113 = vsel %vm60, %v42, 0
    %115 = vmatprep.subr.mxu0 0.0
    %116 = vmatpush1.xpose.msra.mxu0 %v68
    %117 = vmatprep.subr.mxu0 0.0
    %118 = vmatpush1.xpose.msra.mxu0 %v71
    %119 = vmatprep.subr.mxu0 0.0
    %120 = vmatpush1.xpose.msra.mxu0 %v74
    %121 = vmatprep.subr.mxu0 0.0
    %122 = vmatpush1.xpose.msra.mxu0 %v77
    %123 = vmatprep.subr.mxu0 0.0
    %124 = vmatpush1.xpose.msra.mxu0 %v80
    %125 = vmatprep.subr.mxu0 0.0
    %126 = vmatpush1.xpose.msra.mxu0 %v83
    %127 = vmatprep.subr.mxu0 0.0
    %128 = vmatpush1.xpose.msra.mxu0 %v86
    %129 = vmatprep.subr.mxu0 0.0
    %130 = vmatpush1.xpose.msra.mxu0 %v89
    %131 = vmatprep.subr.mxu0 0.0
    %132 = vmatpush1.xpose.msra.mxu0 %v92
    %133 = vmatprep.subr.mxu0 0.0
    %134 = vmatpush1.xpose.msra.mxu0 %v95
    %135 = vmatprep.subr.mxu0 0.0
    %136 = vmatpush1.xpose.msra.mxu0 %v98
    %137 = vmatprep.subr.mxu0 0.0
    %138 = vmatpush1.xpose.msra.mxu0 %v101
    %139 = vmatprep.subr.mxu0 0.0
    %140 = vmatpush1.xpose.msra.mxu0 %v104
    %141 = vmatprep.subr.mxu0 0.0
    %142 = vmatpush1.xpose.msra.mxu0 %v107
    %143 = vmatprep.subr.mxu0 0.0
    %144 = vmatpush1.xpose.msra.mxu0 %v110
    %145 = vmatprep.subr.mxu0 0.0
    %146 = vmatpush1.xpose.msra.mxu0 %v113
    %147 = vmatprep.subr.mxu0 0.0
    %148 = vmatpush1.xpose.msra.mxu0 0.0
    %149 = vmatprep.subr.mxu0 0.0
    %150 = vmatpush1.xpose.msra.mxu0 0.0
    %151 = vmatprep.subr.mxu0 0.0
    %152 = vmatpush1.xpose.msra.mxu0 0.0
    %153 = vmatprep.subr.mxu0 0.0
    %154 = vmatpush1.xpose.msra.mxu0 0.0
    %155 = vmatprep.subr.mxu0 0.0
    %156 = vmatpush1.xpose.msra.mxu0 0.0
    %157 = vmatprep.subr.mxu0 0.0
    %158 = vmatpush1.xpose.msra.mxu0 0.0
    %159 = vmatprep.subr.mxu0 0.0
    %160 = vmatpush1.xpose.msra.mxu0 0.0
    %161 = vmatprep.subr.mxu0 0.0
    %162 = vmatpush1.xpose.msra.mxu0 0.0
    %163 = vmatprep.subr.mxu0 0.0
    %164 = vmatpush1.xpose.msra.mxu0 0.0
    %165 = vmatprep.subr.mxu0 0.0
    %166 = vmatpush1.xpose.msra.mxu0 0.0
    %167 = vmatprep.subr.mxu0 0.0
    %168 = vmatpush1.xpose.msra.mxu0 0.0
    %169 = vmatprep.subr.mxu0 0.0
    %170 = vmatpush1.xpose.msra.mxu0 0.0
    %171 = vmatprep.subr.mxu0 0.0
    %172 = vmatpush1.xpose.msra.mxu0 0.0
    %173 = vmatprep.subr.mxu0 0.0
    %174 = vmatpush1.xpose.msra.mxu0 0.0
    %175 = vmatprep.subr.mxu0 0.0
    %176 = vmatpush1.xpose.msra.mxu0 0.0
    %177 = vmatprep.subr.mxu0 0.0
    %178 = vmatpush1.xpose.msra.mxu0 0.0
    %179 = vmatprep.mubr.f32.mxu0 0.0
    %180 = vmatmul.mubr.f32.gmra.mrb[0].mxu0 %v62
    %v181 = vpop.f32.mrb[0].mxu0
    %v182 = vadd.f32 %v53, %v181
    %v183 = vpop.f32.mrb[0].mxu0
    %184 = vmatprep.mubr.f32.mxu0 0.0
    %185 = vmatmul.mubr.f32.gmra.mrb[0].mxu0 %v65
    %v186 = vpop.f32.mrb[0].mxu0
    %v187 = vadd.f32 %v58, %v186
    %v188 = vpop.f32.mrb[0].mxu0
    %189 = vdwg.mxu0
    %v190 = vmax.f32 %v182, 0.0
    %v191 = vmax.f32 %v187, 0.0
    %v192 = vld [vmem:[%s4] sm:$0xff]
    %v193 = vld [vmem:[%s4 + $0x8] sm:$0xff]
    %195 = vset.pattern.permute.xlu0 0
    %196 = vperm.xlu0 %195, %v192
    %v197 = vpop.permute.xlu0 %196
    %200 = vset.pattern.permute.xlu0 0
    %201 = vperm.xlu0 %200, %v193
    %v202 = vpop.permute.xlu0 %201
    %vm204 = vcmask 130048
    %v206 = vsel %vm204, %v45, 0
    %v209 = vsel %vm204, %v46, 0
    %211 = vmatprep.subr.mxu0 0.0
    %212 = vmatpush1.msra.mxu0 %v190
    %213 = vmatprep.subr.mxu0 0.0
    %214 = vmatpush1.msra.mxu0 %v191
    %215 = vmatprep.subr.mxu0 0.0
    %216 = vmatpush1.msra.mxu0 0.0
    %217 = vmatprep.subr.mxu0 0.0
    %218 = vmatpush1.msra.mxu0 0.0
    %219 = vmatprep.subr.mxu0 0.0
    %220 = vmatpush1.msra.mxu0 0.0
    %221 = vmatprep.subr.mxu0 0.0
    %222 = vmatpush1.msra.mxu0 0.0
    %223 = vmatprep.subr.mxu0 0.0
    %224 = vmatpush1.msra.mxu0 0.0
    %225 = vmatprep.subr.mxu0 0.0
    %226 = vmatpush1.msra.mxu0 0.0
    %227 = vmatprep.subr.mxu0 0.0
    %228 = vmatpush1.msra.mxu0 0.0
    %229 = vmatprep.subr.mxu0 0.0
    %230 = vmatpush1.msra.mxu0 0.0
    %231 = vmatprep.subr.mxu0 0.0
    %232 = vmatpush1.msra.mxu0 0.0
    %233 = vmatprep.subr.mxu0 0.0
    %234 = vmatpush1.msra.mxu0 0.0
    %235 = vmatprep.subr.mxu0 0.0
    %236 = vmatpush1.msra.mxu0 0.0
    %237 = vmatprep.subr.mxu0 0.0
    %238 = vmatpush1.msra.mxu0 0.0
    %239 = vmatprep.subr.mxu0 0.0
    %240 = vmatpush1.msra.mxu0 0.0
    %241 = vmatprep.subr.mxu0 0.0
    %242 = vmatpush1.msra.mxu0 0.0
    %243 = vmatprep.subr.mxu0 0.0
    %244 = vmatpush1.msra.mxu0 0.0
    %245 = vmatprep.subr.mxu0 0.0
    %246 = vmatpush1.msra.mxu0 0.0
    %247 = vmatprep.subr.mxu0 0.0
    %248 = vmatpush1.msra.mxu0 0.0
    %249 = vmatprep.subr.mxu0 0.0
    %250 = vmatpush1.msra.mxu0 0.0
    %251 = vmatprep.subr.mxu0 0.0
    %252 = vmatpush1.msra.mxu0 0.0
    %253 = vmatprep.subr.mxu0 0.0
    %254 = vmatpush1.msra.mxu0 0.0
    %255 = vmatprep.subr.mxu0 0.0
    %256 = vmatpush1.msra.mxu0 0.0
    %257 = vmatprep.subr.mxu0 0.0
    %258 = vmatpush1.msra.mxu0 0.0
    %259 = vmatprep.subr.mxu0 0.0
    %260 = vmatpush1.msra.mxu0 0.0
    %261 = vmatprep.subr.mxu0 0.0
    %262 = vmatpush1.msra.mxu0 0.0
    %263 = vmatprep.subr.mxu0 0.0
    %264 = vmatpush1.msra.mxu0 0.0
    %265 = vmatprep.subr.mxu0 0.0
    %266 = vmatpush1.msra.mxu0 0.0
    %267 = vmatprep.subr.mxu0 0.0
    %268 = vmatpush1.msra.mxu0 0.0
    %269 = vmatprep.subr.mxu0 0.0
    %270 = vmatpush1.msra.mxu0 0.0
    %271 = vmatprep.subr.mxu0 0.0
    %272 = vmatpush1.msra.mxu0 0.0
    %273 = vmatprep.subr.mxu0 0.0
    %274 = vmatpush1.msra.mxu0 0.0
    %275 = vmatprep.mubr.f32.mxu0 0.0
    %276 = vmatmul.mubr.f32.gmra.mrb[0].mxu0 %v206
    %v277 = vpop.f32.mrb[0].mxu0
    %v278 = vadd.f32 %v197, %v277
    %v279 = vpop.f32.mrb[0].mxu0
    %280 = vmatprep.mubr.f32.mxu0 0.0
    %281 = vmatmul.mubr.f32.gmra.mrb[0].mxu0 %v209
    %v282 = vpop.f32.mrb[0].mxu0
    %v283 = vadd.f32 %v202, %v282
    %v284 = vpop.f32.mrb[0].mxu0
    %285 = vdwg.mxu0
    %v286 = vmax.f32 %v278, 0.0
    %v287 = vmax.f32 %v283, 0.0
    %v288 = vld [vmem:[%s6] sm:$0xf]
    %290 = vset.pattern.permute.xlu0 0
    %291 = vperm.xlu0 %290, %v288
    %v292 = vpop.permute.xlu0 %291
    %v295 = vsel %vm204, %v47, 0
    %297 = vmatprep.subr.mxu0 0.0
    %298 = vmatpush1.msra.mxu0 %v286
    %299 = vmatprep.subr.mxu0 0.0
    %300 = vmatpush1.msra.mxu0 %v287
    %301 = vmatprep.subr.mxu0 0.0
    %302 = vmatpush1.msra.mxu0 0.0
    %303 = vmatprep.subr.mxu0 0.0
    %304 = vmatpush1.msra.mxu0 0.0
    %305 = vmatprep.subr.mxu0 0.0
    %306 = vmatpush1.msra.mxu0 0.0
    %307 = vmatprep.subr.mxu0 0.0
    %308 = vmatpush1.msra.mxu0 0.0
    %309 = vmatprep.subr.mxu0 0.0
    %310 = vmatpush1.msra.mxu0 0.0
    %311 = vmatprep.subr.mxu0 0.0
    %312 = vmatpush1.msra.mxu0 0.0
    %313 = vmatprep.subr.mxu0 0.0
    %314 = vmatpush1.msra.mxu0 0.0
    %315 = vmatprep.subr.mxu0 0.0
    %316 = vmatpush1.msra.mxu0 0.0
    %317 = vmatprep.subr.mxu0 0.0
    %318 = vmatpush1.msra.mxu0 0.0
    %319 = vmatprep.subr.mxu0 0.0
    %320 = vmatpush1.msra.mxu0 0.0
    %321 = vmatprep.subr.mxu0 0.0
    %322 = vmatpush1.msra.mxu0 0.0
    %323 = vmatprep.subr.mxu0 0.0
    %324 = vmatpush1.msra.mxu0 0.0
    %325 = vmatprep.subr.mxu0 0.0
    %326 = vmatpush1.msra.mxu0 0.0
    %327 = vmatprep.subr.mxu0 0.0
    %328 = vmatpush1.msra.mxu0 0.0
    %329 = vmatprep.subr.mxu0 0.0
    %330 = vmatpush1.msra.mxu0 0.0
    %331 = vmatprep.subr.mxu0 0.0
    %332 = vmatpush1.msra.mxu0 0.0
    %333 = vmatprep.subr.mxu0 0.0
    %334 = vmatpush1.msra.mxu0 0.0
    %335 = vmatprep.subr.mxu0 0.0
    %336 = vmatpush1.msra.mxu0 0.0
    %337 = vmatprep.subr.mxu0 0.0
    %338 = vmatpush1.msra.mxu0 0.0
    %339 = vmatprep.subr.mxu0 0.0
    %340 = vmatpush1.msra.mxu0 0.0
    %341 = vmatprep.subr.mxu0 0.0
    %342 = vmatpush1.msra.mxu0 0.0
    %343 = vmatprep.subr.mxu0 0.0
    %344 = vmatpush1.msra.mxu0 0.0
    %345 = vmatprep.subr.mxu0 0.0
    %346 = vmatpush1.msra.mxu0 0.0
    %347 = vmatprep.subr.mxu0 0.0
    %348 = vmatpush1.msra.mxu0 0.0
    %349 = vmatprep.subr.mxu0 0.0
    %350 = vmatpush1.msra.mxu0 0.0
    %351 = vmatprep.subr.mxu0 0.0
    %352 = vmatpush1.msra.mxu0 0.0
    %353 = vmatprep.subr.mxu0 0.0
    %354 = vmatpush1.msra.mxu0 0.0
    %355 = vmatprep.subr.mxu0 0.0
    %356 = vmatpush1.msra.mxu0 0.0
    %357 = vmatprep.subr.mxu0 0.0
    %358 = vmatpush1.msra.mxu0 0.0
    %359 = vmatprep.subr.mxu0 0.0
    %360 = vmatpush1.msra.mxu0 0.0
    %361 = vmatprep.mubr.f32.mxu0 0.0
    %362 = vmatmul.mubr.f32.gmra.mrb[0].mxu0 %v295
    %v363 = vpop.f32.mrb[0].mxu0
    %v364 = vadd.f32 %v292, %v363
    %v365 = vpop.f32.mrb[0].mxu0
    %366 = vdwg.mxu0
    %vm367 = vcmask 1043456
    %v368 = vsel %vm367, %v364, -inf
    %v369 = vrot.slane %v368, 4
    %v370 = vmax.f32 %v368, %v369
    %v371 = vrot.slane %v370, 2
    %v372 = vmax.f32 %v370, %v371
    %v373 = vrot.slane %v372, 1
    %v374 = vmax.f32 %v372, %v373
    %v375 = vsub.f32 %v364, %v374
    %v376 = vmul.f32 %v375, 1.442695
    %v377 = vpow.pop %v376
    %v378 = vsel %vm367, %v377, 0.0
    %v379 = vrot.slane %v378, 4
    %v380 = vadd.f32 %v378, %v379
    %v381 = vrot.slane %v380, 2
    %v382 = vadd.f32 %v380, %v381
    %v383 = vrot.slane %v382, 1
    %v384 = vadd.f32 %v382, %v383
    %v385 = vrcp.pop %v384
    %v386 = vmul.f32 %v384, %v385
    %v387 = vsub.f32 2.0, %v386
    %v388 = vmul.f32 %v385, %v387
    %v389 = vmul.f32 %v377, %v388
    %390 = vst [vmem:[#allocation2] sm:$0xf] %v389
    // Predicated region
    $region30: #{tpu_custom_call.1} parent=1 // pred_check
      _
    $region31: #{tpu_custom_call.1} parent=1 // pred_check_branch
      %392 = sbr.rel (0) target = $region33
    $region32: #{tpu_custom_call.1} parent=1 // pred_region
      %s394 = ssub.s32 64, 64
      %395 = vsyncadd [#allocation3], %s394
      %s397 = sshll.u32 [#allocation2], 4
      %s398 = int_to_ptr.vmem [resolvable:$true] %s397
      %400 = dma.vmem_to_hbm [thread:$0]  %s398, 64, %s7, [#allocation3]
    $region33: #{tpu_custom_call.1} parent=1 // pred_fallthru
      _
    // Predicated region
    $region34: #{tpu_custom_call.1} parent=1 // pred_check
      _
    $region35: #{tpu_custom_call.1} parent=1 // pred_check_branch
      %402 = sbr.rel (0) target = $region37
    $region36: #{tpu_custom_call.1} parent=1 // pred_region
      %403 = dma.done [#allocation3], 64
    $region37: #{tpu_custom_call.1} parent=1 // pred_fallthru
      _
    %404 = vsyncpa [#allocation3], 1

</llo_original>
